<compile_context>
chip_gen: v7x
topology: tpu7x:2x2x1
jax: 0.10.0
libtpu: 0.0.40
codegen_flags: <defaults>
</compile_context>

<pallas_src>
import functools

import jax
import jax.numpy as jnp
from jax import lax
from jax.experimental import pallas as pl
from jax.experimental.pallas import tpu as pltpu


def _edge_part_kernel(zt_ref, row_ref, col_ref, o_ref, *, n_coms, dim_d, inv_tau):
    # zt_ref : [Dp, Np]  node-community affiliations, transposed & zero-padded,
    #                    VMEM-resident for the whole grid.
    # row_ref: [1, TE]   int32 source-node index per edge in this tile.
    # col_ref: [1, TE]   int32 target-node index per edge in this tile.
    # o_ref  : [K, TE]   softmax-over-communities edge weights (lane-dense store).
    dim_dp, n_nodes_p = zt_ref.shape
    tile_e = row_ref.shape[1]

    zt = zt_ref[...]                                                    # [Dp, Np]

    # In-kernel gather: one-hot(node) matmuls on the MXU (no HBM slab traffic).
    node_iota = lax.broadcasted_iota(jnp.int32, (n_nodes_p, tile_e), 0)  # [Np, TE]
    oh_start = (node_iota == row_ref[...]).astype(zt.dtype)              # [Np, TE]
    oh_end = (node_iota == col_ref[...]).astype(zt.dtype)                # [Np, TE]
    zs_t = jnp.dot(zt, oh_start, preferred_element_type=jnp.float32)     # [Dp, TE]
    ze_t = jnp.dot(zt, oh_end, preferred_element_type=jnp.float32)       # [Dp, TE]

    prod_t = zs_t * ze_t                                                 # [Dp, TE] (VPU)

    # Block-diagonal community selector with 1/tau folded in (compile-time
    # constant values; built from iota/compare/mul only — no runtime int div).
    # Padded d-indices (>= dim_d) fall in no chunk -> zero selector entries.
    dc = dim_d // n_coms
    k_iota = lax.broadcasted_iota(jnp.int32, (n_coms, dim_dp), 0)
    d_iota = lax.broadcasted_iota(jnp.int32, (n_coms, dim_dp), 1)
    lower = k_iota * dc
    in_chunk = jnp.logical_and(d_iota >= lower, d_iota < lower + dc)
    sel_t = in_chunk.astype(jnp.float32) * inv_tau                       # [K, Dp]

    # logits[k, e] = (1/tau) * sum_{d in chunk k} z[row[e], d] * z[col[e], d]
    logits = jnp.dot(sel_t, prod_t, preferred_element_type=jnp.float32)  # [K, TE]

    # Softmax over the community (sublane) axis.
    m = jnp.max(logits, axis=0, keepdims=True)                           # [1, TE]
    e = jnp.exp(logits - m)                                              # EUP
    denom = jnp.sum(e, axis=0, keepdims=True)                            # [1, TE]
    o_ref[...] = (e * pl.reciprocal(denom, approx=True)).astype(o_ref.dtype)


def _round_up(x, m):
    return ((x + m - 1) // m) * m


def edge_part_forward(z, edge_index, *, n_coms, tau=1.0, tile_e=2048):
    """Pallas implementation of EdgePart.forward (eval mode).

    z:          [N, D] float32, D divisible by n_coms (equal tensor_split chunks).
    edge_index: [2, E] integer node indices.
    Returns:    tuple of n_coms arrays, each of shape [E] float32.
    """
    n_nodes, dim_d = z.shape
    assert dim_d % n_coms == 0, "assumes D divisible by N_coms (equal tensor_split chunks)"
    assert tile_e % 128 == 0
    E = int(edge_index.shape[1])

    # Clamp the tile so tiny edge lists are not over-padded; pad E up to a
    # multiple of the tile (padded edges use node 0 and get sliced off).
    tile = min(tile_e, _round_up(max(E, 1), 128))
    e_pad = _round_up(max(E, 1), tile)

    row = edge_index[0].astype(jnp.int32)
    col = edge_index[1].astype(jnp.int32)
    if e_pad != E:
        pad = e_pad - E
        row = jnp.concatenate([row, jnp.zeros((pad,), jnp.int32)])
        col = jnp.concatenate([col, jnp.zeros((pad,), jnp.int32)])
    row2 = row.reshape(1, e_pad)
    col2 = col.reshape(1, e_pad)

    # z^T, zero-padded to (8, 128)-aligned [Dp, Np]: unmasked vector loads and
    # tile-aligned MXU contraction.  Padding contributes exact zeros.
    d_pad = _round_up(dim_d, 8)
    n_pad = _round_up(n_nodes, 128)
    z_t = jnp.zeros((d_pad, n_pad), jnp.float32).at[:dim_d, :n_nodes].set(
        z.T.astype(jnp.float32))

    kernel = functools.partial(_edge_part_kernel, n_coms=n_coms, dim_d=dim_d,
                               inv_tau=float(1.0 / tau))

    cost = pl.CostEstimate(
        flops=int(2 * (2 * e_pad * n_pad * d_pad)            # two one-hot gather matmuls
                  + e_pad * d_pad                             # elementwise product
                  + 2 * e_pad * d_pad * n_coms                # selector matmul
                  + 5 * e_pad * n_coms),                      # softmax arithmetic
        transcendentals=int(e_pad * n_coms + e_pad),          # exp + reciprocal
        bytes_accessed=int(d_pad * n_pad * 4 + 2 * e_pad * 4 + n_coms * e_pad * 4),
    )

    out = pl.pallas_call(
        kernel,
        out_shape=jax.ShapeDtypeStruct((n_coms, e_pad), jnp.float32),
        grid_spec=pltpu.PrefetchScalarGridSpec(
            num_scalar_prefetch=0,
            grid=(e_pad // tile,),
            in_specs=[
                pl.BlockSpec((d_pad, n_pad), lambda i: (0, 0)),   # z^T, resident
                pl.BlockSpec((1, tile), lambda i: (0, i)),        # row indices tile
                pl.BlockSpec((1, tile), lambda i: (0, i)),        # col indices tile
            ],
            out_specs=pl.BlockSpec((n_coms, tile), lambda i: (0, i)),  # lane-dense out
        ),
        compiler_params=pltpu.CompilerParams(
            dimension_semantics=("parallel",),
            vmem_limit_bytes=32 * 1024 * 1024,   # safe scoped budget on v5e/v6e/v7x
        ),
        cost_estimate=cost,
    )(z_t, row2, col2)

    out = out[:, :E]
    # torch.unbind(softmax(stacked, dim=0), dim=0) -> contiguous row slices of [K, E].
    return tuple(out[k] for k in range(n_coms))


def _reference(z, edge_index, *, n_coms, tau=1.0):
    """Pure-JAX reference mirroring the PyTorch module (eval mode)."""
    row, col = edge_index[0], edge_index[1]
    z_chunks = jnp.split(z, n_coms, axis=-1)
    unnorm = jnp.stack(
        [jnp.sum(zk[row] * zk[col], axis=1) for zk in z_chunks], axis=0)   # [K, E]
    w = jax.nn.softmax(unnorm / tau, axis=0)
    return tuple(w[k] for k in range(n_coms))


if __name__ == "__main__":
    key = jax.random.PRNGKey(0)
    k_z, k_row, k_col = jax.random.split(key, 3)

    N_NODES = 64
    D = 32            # total affiliation dim
    N_COMS = 4        # -> chunk size 8 per community
    E = 250           # not a multiple of 128 -> exercises padding path
    TAU = 1.0

    z = jax.random.normal(k_z, (N_NODES, D), dtype=jnp.float32)
    row = jax.random.randint(k_row, (E,), 0, N_NODES, dtype=jnp.int32)
    col = jax.random.randint(k_col, (E,), 0, N_NODES, dtype=jnp.int32)
    edge_index = jnp.stack([row, col], axis=0)

    out = edge_part_forward(z, edge_index, n_coms=N_COMS, tau=TAU)
    out = jax.block_until_ready(out)

    ref = _reference(z, edge_index, n_coms=N_COMS, tau=TAU)
    for o, r in zip(out, ref):
        assert o.shape == (E,)
        # Tolerance loosened slightly vs pure-f32: in-kernel softmax uses the
        # approximate EUP reciprocal.
        assert jnp.allclose(o, r, atol=2e-3, rtol=2e-3), "mismatch vs reference"

    print("KERNEL_OK")
</pallas_src>

<mosaic_0001>
module attributes {stable_mosaic.version = 11 : i64} {
  func.func @_edge_part_kernel(%arg0: i32, %arg1: memref<32x128xf32, #tpu.memory_space<vmem>>, %arg2: memref<1x256xi32, #tpu.memory_space<vmem>>, %arg3: memref<1x256xi32, #tpu.memory_space<vmem>>, %arg4: memref<4x256xf32, #tpu.memory_space<vmem>>) attributes {dimension_semantics = [#tpu.dimension_semantics<parallel>], iteration_bounds = array<i64: 1>, scalar_prefetch = 0 : i64, scratch_operands = 0 : i64, tpu.core_type = #tpu.core_type<tc>, window_params = [{pipeline_mode = #tpu.pipeline_mode<synchronous>, transform_indices = @transform_0, window_bounds = array<i64: 32, 128>}, {transform_indices = @transform_1, window_bounds = array<i64: 1, 256>}, {transform_indices = @transform_2, window_bounds = array<i64: 1, 256>}, {transform_indices = @transform_3, window_bounds = array<i64: 4, 256>}]} {
    %c0 = arith.constant 0 : index
    %c0_0 = arith.constant 0 : index
    %0 = vector.load %arg1[%c0, %c0_0] : memref<32x128xf32, #tpu.memory_space<vmem>>, vector<32x128xf32>
    %1 = tpu.iota {dimensions = array<i32: 0>} : vector<128x256xi32>
    %c0_1 = arith.constant 0 : index
    %c0_2 = arith.constant 0 : index
    %2 = vector.load %arg2[%c0_1, %c0_2] : memref<1x256xi32, #tpu.memory_space<vmem>>, vector<1x256xi32>
    %3 = vector.broadcast %2 : vector<1x256xi32> to vector<128x256xi32>
    %4 = arith.cmpi eq, %1, %3 : vector<128x256xi32>
    %5 = arith.extui %4 : vector<128x256xi1> to vector<128x256xi32>
    %6 = arith.sitofp %5 : vector<128x256xi32> to vector<128x256xf32>
    %c0_3 = arith.constant 0 : index
    %c0_4 = arith.constant 0 : index
    %7 = vector.load %arg3[%c0_3, %c0_4] : memref<1x256xi32, #tpu.memory_space<vmem>>, vector<1x256xi32>
    %8 = vector.broadcast %7 : vector<1x256xi32> to vector<128x256xi32>
    %9 = arith.cmpi eq, %1, %8 : vector<128x256xi32>
    %10 = arith.extui %9 : vector<128x256xi1> to vector<128x256xi32>
    %11 = arith.sitofp %10 : vector<128x256xi32> to vector<128x256xf32>
    %cst = arith.constant dense<0.000000e+00> : vector<32x256xf32>
    %12 = tpu.matmul %0, %6, %cst {dimension_numbers = #tpu.dot_dimension_numbers<[1], [0], [0], [1], [0, 0, 1, 1], [], []>} : vector<32x128xf32>, vector<128x256xf32>, vector<32x256xf32> -> vector<32x256xf32>
    %cst_5 = arith.constant dense<0.000000e+00> : vector<32x256xf32>
    %13 = tpu.matmul %0, %11, %cst_5 {dimension_numbers = #tpu.dot_dimension_numbers<[1], [0], [0], [1], [0, 0, 1, 1], [], []>} : vector<32x128xf32>, vector<128x256xf32>, vector<32x256xf32> -> vector<32x256xf32>
    %14 = arith.mulf %12, %13 : vector<32x256xf32>
    %15 = tpu.iota {dimensions = array<i32: 0>} : vector<4x32xi32>
    %16 = tpu.iota {dimensions = array<i32: 1>} : vector<4x32xi32>
    %c8_i32 = arith.constant 8 : i32
    %17 = vector.broadcast %c8_i32 : i32 to vector<4x32xi32>
    %18 = arith.muli %15, %17 : vector<4x32xi32>
    %19 = arith.cmpi sge, %16, %18 : vector<4x32xi32>
    %c8_i32_6 = arith.constant 8 : i32
    %20 = vector.broadcast %c8_i32_6 : i32 to vector<4x32xi32>
    %21 = arith.addi %18, %20 : vector<4x32xi32>
    %22 = arith.cmpi slt, %16, %21 : vector<4x32xi32>
    %23 = arith.andi %19, %22 : vector<4x32xi1>
    %24 = arith.extui %23 : vector<4x32xi1> to vector<4x32xi32>
    %25 = arith.sitofp %24 : vector<4x32xi32> to vector<4x32xf32>
    %cst_7 = arith.constant 1.000000e+00 : f32
    %26 = vector.broadcast %cst_7 : f32 to vector<4x32xf32>
    %27 = arith.mulf %25, %26 : vector<4x32xf32>
    %cst_8 = arith.constant dense<0.000000e+00> : vector<4x256xf32>
    %28 = tpu.matmul %27, %14, %cst_8 {dimension_numbers = #tpu.dot_dimension_numbers<[1], [0], [0], [1], [0, 0, 1, 1], [], []>} : vector<4x32xf32>, vector<32x256xf32>, vector<4x256xf32> -> vector<4x256xf32>
    %cst_9 = arith.constant dense<0xFF800000> : vector<256xf32>
    %29 = vector.multi_reduction <maximumf>, %28, %cst_9 [0] : vector<4x256xf32> to vector<256xf32>
    %30 = vector.shape_cast %29 : vector<256xf32> to vector<1x256xf32>
    %31 = vector.broadcast %30 : vector<1x256xf32> to vector<4x256xf32>
    %32 = arith.subf %28, %31 : vector<4x256xf32>
    %33 = math.exp %32 : vector<4x256xf32>
    %cst_10 = arith.constant dense<0.000000e+00> : vector<256xf32>
    %34 = vector.multi_reduction <add>, %33, %cst_10 [0] : vector<4x256xf32> to vector<256xf32>
    %35 = vector.shape_cast %34 : vector<256xf32> to vector<1x256xf32>
    %36 = tpu.reciprocal %35 {approx = true} : vector<1x256xf32> -> vector<1x256xf32>
    %37 = vector.broadcast %36 : vector<1x256xf32> to vector<4x256xf32>
    %38 = arith.mulf %33, %37 : vector<4x256xf32>
    %c0_11 = arith.constant 0 : index
    %c0_12 = arith.constant 0 : index
    %39 = vector.load %arg4[%c0_11, %c0_12] : memref<4x256xf32, #tpu.memory_space<vmem>>, vector<4x256xf32>
    tpu.vector_store %arg4[%c0_11, %c0_12], %38 {strides = array<i32>} : memref<4x256xf32, #tpu.memory_space<vmem>>, vector<4x256xf32>,
    return
  }
  func.func @transform_0(%arg0: i32) -> (i32, i32) {
    %c0_i32 = arith.constant 0 : i32
    %c0_i32_0 = arith.constant 0 : i32
    %c0_i32_1 = arith.constant 0 : i32
    return %c0_i32, %c0_i32_0 : i32, i32
  }
  func.func @transform_1(%arg0: i32) -> (i32, i32) {
    %c0_i32 = arith.constant 0 : i32
    %c0_i32_0 = arith.constant 0 : i32
    return %c0_i32, %arg0 : i32, i32
  }
  func.func @transform_2(%arg0: i32) -> (i32, i32) {
    %c0_i32 = arith.constant 0 : i32
    %c0_i32_0 = arith.constant 0 : i32
    return %c0_i32, %arg0 : i32, i32
  }
  func.func @transform_3(%arg0: i32) -> (i32, i32) {
    %c0_i32 = arith.constant 0 : i32
    %c0_i32_0 = arith.constant 0 : i32
    return %c0_i32, %arg0 : i32, i32
  }
}

</mosaic_0001>

<llo_original>
// kernel: tpu_custom_call.1
$region0: #{tpu_custom_call.1}
  #allocation0 [shape = 'u32[]', space=smem, size = 0x4, offset = 0x4, fixed_abs, tag = 'smem constant byte address 0x4 - core index']
  #allocation1 [shape = 'u32[144,128]{1,0:T(1,128)}', space=vmem, size = 0x12000, scoped, tag = 'internal scratch']
  %s0 = inlined_call_operand.hbm [shape: f32[32,128], index: 0, kind: input, shape index: {}]
  %s1 = inlined_call_operand.vmem [shape: s32[1,256], index: 1, kind: input, shape index: {}]
  %s2 = inlined_call_operand.vmem [shape: s32[1,256], index: 2, kind: input, shape index: {}]
  %s3 = inlined_call_operand.hbm [shape: f32[4,256], index: 3, kind: output, shape index: {}]
  %s4 = sld [smem:[#allocation0]]
  $region26: #{tpu_custom_call.1} parent=0
    _
  %s6 = ssub.s32 1, %s4
  %s7 = scalar_select 0, %s6, %s4
  $region1: #{tpu_custom_call.1} parent=0
    #allocation2 [shape = 'u8[16384]{0}', space=vmem, size = 0x4000, scoped, tag = 'input window, operand 0, single buffered']
    #allocation3 [shape = 's32[1]{0}', space=sflag, size = 0x4, scoped, tag = 'scoped memory for tpu_custom_call.1']
    #allocation4 [shape = 's32[1]{0}', space=sflag, size = 0x4, scoped, tag = 'scoped memory for tpu_custom_call.1']
    #allocation5 [shape = 'u8[4096]{0}', space=vmem, size = 0x1000, scoped, tag = 'output window, operand 0, single buffered']
    %8 = vsyncpa [#allocation3], 0
    %9 = vsyncpa [#allocation4], 0
    // Predicated region
    $region2: #{tpu_custom_call.1} parent=1 // pred_check
      _
    $region3: #{tpu_custom_call.1} parent=1 // pred_check_branch
      %11 = sbr.rel (0) target = $region5
    $region4: #{tpu_custom_call.1} parent=1 // pred_region
      %s13 = ssub.s32 512, 512
      %14 = vsyncadd [#allocation3], %s13
      %s15 = sshll.u32 [#allocation2], 4
      %s16 = int_to_ptr.vmem [resolvable:$true] %s15
      %21 = dma.hbm_to_vmem [thread:$0]  %s0, 512, %s16, [#allocation3], 128, 128, 8
    $region5: #{tpu_custom_call.1} parent=1 // pred_fallthru
      _
    // Predicated region
    $region6: #{tpu_custom_call.1} parent=1 // pred_check
      _
    $region7: #{tpu_custom_call.1} parent=1 // pred_check_branch
      %23 = sbr.rel (0) target = $region9
    $region8: #{tpu_custom_call.1} parent=1 // pred_region
      _
    $region9: #{tpu_custom_call.1} parent=1 // pred_fallthru
      _
    // Predicated region
    $region10: #{tpu_custom_call.1} parent=1 // pred_check
      _
    $region11: #{tpu_custom_call.1} parent=1 // pred_check_branch
      %25 = sbr.rel (0) target = $region13
    $region12: #{tpu_custom_call.1} parent=1 // pred_region
      _
    $region13: #{tpu_custom_call.1} parent=1 // pred_fallthru
      _
    // Predicated region
    $region14: #{tpu_custom_call.1} parent=1 // pred_check
      _
    $region15: #{tpu_custom_call.1} parent=1 // pred_check_branch
      %27 = sbr.rel (0) target = $region17
    $region16: #{tpu_custom_call.1} parent=1 // pred_region
      %28 = dma.done [#allocation3], 512
    $region17: #{tpu_custom_call.1} parent=1 // pred_fallthru
      _
    %v29 = vld [vmem:[#allocation2] sm:$0xff]
    %v30 = vld [vmem:[#allocation2 + $0x8] sm:$0xff]
    %v31 = vld [vmem:[#allocation2 + $0x10] sm:$0xff]
    %v32 = vld [vmem:[#allocation2 + $0x18] sm:$0xff]
    %v33 = vlaneseq
    %v34 = vshrl.u32 %v33, 7
    %v35 = vadd.s32 %v34, 8
    %v36 = vadd.s32 %v34, 16
    %v37 = vadd.s32 %v34, 24
    %v38 = vadd.s32 %v34, 32
    %v39 = vadd.s32 %v34, 40
    %v40 = vadd.s32 %v34, 48
    %v41 = vadd.s32 %v34, 56
    %v42 = vadd.s32 %v34, 64
    %v43 = vadd.s32 %v34, 72
    %v44 = vadd.s32 %v34, 80
    %v45 = vadd.s32 %v34, 88
    %v46 = vadd.s32 %v34, 96
    %v47 = vadd.s32 %v34, 104
    %v48 = vadd.s32 %v34, 112
    %v49 = vadd.s32 %v34, 120
    %v50 = vld [vmem:[%s1] sm:$0x3]
    %v51 = vlaneseq
    %v52 = vshrl.u32 %v51, 7
    %v53 = vsub.s32 0, %v52
    %v54 = vrot.slane %v50, %v53
    %v55 = vlaneseq
    %v56 = vshrl.u32 %v55, 7
    %v57 = vsub.s32 1, %v56
    %v58 = vrot.slane %v50, %v57
    %vm59 = vcmp.eq.s32.totalorder %v34, %v54
    %vm60 = vcmp.eq.s32.totalorder %v34, %v58
    %vm61 = vcmp.eq.s32.totalorder %v35, %v54
    %vm62 = vcmp.eq.s32.totalorder %v35, %v58
    %vm63 = vcmp.eq.s32.totalorder %v36, %v54
    %vm64 = vcmp.eq.s32.totalorder %v36, %v58
    %vm65 = vcmp.eq.s32.totalorder %v37, %v54
    %vm66 = vcmp.eq.s32.totalorder %v37, %v58
    %vm67 = vcmp.eq.s32.totalorder %v38, %v54
    %vm68 = vcmp.eq.s32.totalorder %v38, %v58
    %vm69 = vcmp.eq.s32.totalorder %v39, %v54
    %vm70 = vcmp.eq.s32.totalorder %v39, %v58
    %vm71 = vcmp.eq.s32.totalorder %v40, %v54
    %vm72 = vcmp.eq.s32.totalorder %v40, %v58
    %vm73 = vcmp.eq.s32.totalorder %v41, %v54
    %vm74 = vcmp.eq.s32.totalorder %v41, %v58
    %vm75 = vcmp.eq.s32.totalorder %v42, %v54
    %vm76 = vcmp.eq.s32.totalorder %v42, %v58
    %vm77 = vcmp.eq.s32.totalorder %v43, %v54
    %vm78 = vcmp.eq.s32.totalorder %v43, %v58
    %vm79 = vcmp.eq.s32.totalorder %v44, %v54
    %vm80 = vcmp.eq.s32.totalorder %v44, %v58
    %vm81 = vcmp.eq.s32.totalorder %v45, %v54
    %vm82 = vcmp.eq.s32.totalorder %v45, %v58
    %vm83 = vcmp.eq.s32.totalorder %v46, %v54
    %vm84 = vcmp.eq.s32.totalorder %v46, %v58
    %vm85 = vcmp.eq.s32.totalorder %v47, %v54
    %vm86 = vcmp.eq.s32.totalorder %v47, %v58
    %vm87 = vcmp.eq.s32.totalorder %v48, %v54
    %vm88 = vcmp.eq.s32.totalorder %v48, %v58
    %vm89 = vcmp.eq.s32.totalorder %v49, %v54
    %vm90 = vcmp.eq.s32.totalorder %v49, %v58
    %v91 = vsel %vm59, 1, 0
    %v92 = vsel %vm60, 1, 0
    %v93 = vsel %vm61, 1, 0
    %v94 = vsel %vm62, 1, 0
    %v95 = vsel %vm63, 1, 0
    %v96 = vsel %vm64, 1, 0
    %v97 = vsel %vm65, 1, 0
    %v98 = vsel %vm66, 1, 0
    %v99 = vsel %vm67, 1, 0
    %v100 = vsel %vm68, 1, 0
    %v101 = vsel %vm69, 1, 0
    %v102 = vsel %vm70, 1, 0
    %v103 = vsel %vm71, 1, 0
    %v104 = vsel %vm72, 1, 0
    %v105 = vsel %vm73, 1, 0
    %v106 = vsel %vm74, 1, 0
    %v107 = vsel %vm75, 1, 0
    %v108 = vsel %vm76, 1, 0
    %v109 = vsel %vm77, 1, 0
    %v110 = vsel %vm78, 1, 0
    %v111 = vsel %vm79, 1, 0
    %v112 = vsel %vm80, 1, 0
    %v113 = vsel %vm81, 1, 0
    %v114 = vsel %vm82, 1, 0
    %v115 = vsel %vm83, 1, 0
    %v116 = vsel %vm84, 1, 0
    %v117 = vsel %vm85, 1, 0
    %v118 = vsel %vm86, 1, 0
    %v119 = vsel %vm87, 1, 0
    %v120 = vsel %vm88, 1, 0
    %v121 = vsel %vm89, 1, 0
    %v122 = vsel %vm90, 1, 0
    %v123 = vcvt.s32.f32 %v91
    %v124 = vcvt.s32.f32 %v92
    %v125 = vcvt.s32.f32 %v93
    %v126 = vcvt.s32.f32 %v94
    %v127 = vcvt.s32.f32 %v95
    %v128 = vcvt.s32.f32 %v96
    %v129 = vcvt.s32.f32 %v97
    %v130 = vcvt.s32.f32 %v98
    %v131 = vcvt.s32.f32 %v99
    %v132 = vcvt.s32.f32 %v100
    %v133 = vcvt.s32.f32 %v101
    %v134 = vcvt.s32.f32 %v102
    %v135 = vcvt.s32.f32 %v103
    %v136 = vcvt.s32.f32 %v104
    %v137 = vcvt.s32.f32 %v105
    %v138 = vcvt.s32.f32 %v106
    %v139 = vcvt.s32.f32 %v107
    %v140 = vcvt.s32.f32 %v108
    %v141 = vcvt.s32.f32 %v109
    %v142 = vcvt.s32.f32 %v110
    %v143 = vcvt.s32.f32 %v111
    %v144 = vcvt.s32.f32 %v112
    %v145 = vcvt.s32.f32 %v113
    %v146 = vcvt.s32.f32 %v114
    %v147 = vcvt.s32.f32 %v115
    %v148 = vcvt.s32.f32 %v116
    %v149 = vcvt.s32.f32 %v117
    %v150 = vcvt.s32.f32 %v118
    %v151 = vcvt.s32.f32 %v119
    %v152 = vcvt.s32.f32 %v120
    %v153 = vcvt.s32.f32 %v121
    %v154 = vcvt.s32.f32 %v122
    %v155 = vld [vmem:[%s2] sm:$0x3]
    %v156 = vlaneseq
    %v157 = vshrl.u32 %v156, 7
    %v158 = vsub.s32 0, %v157
    %v159 = vrot.slane %v155, %v158
    %v160 = vlaneseq
    %v161 = vshrl.u32 %v160, 7
    %v162 = vsub.s32 1, %v161
    %v163 = vrot.slane %v155, %v162
    %vm164 = vcmp.eq.s32.totalorder %v34, %v159
    %vm165 = vcmp.eq.s32.totalorder %v34, %v163
    %vm166 = vcmp.eq.s32.totalorder %v35, %v159
    %vm167 = vcmp.eq.s32.totalorder %v35, %v163
    %vm168 = vcmp.eq.s32.totalorder %v36, %v159
    %vm169 = vcmp.eq.s32.totalorder %v36, %v163
    %vm170 = vcmp.eq.s32.totalorder %v37, %v159
    %vm171 = vcmp.eq.s32.totalorder %v37, %v163
    %vm172 = vcmp.eq.s32.totalorder %v38, %v159
    %vm173 = vcmp.eq.s32.totalorder %v38, %v163
    %vm174 = vcmp.eq.s32.totalorder %v39, %v159
    %vm175 = vcmp.eq.s32.totalorder %v39, %v163
    %vm176 = vcmp.eq.s32.totalorder %v40, %v159
    %vm177 = vcmp.eq.s32.totalorder %v40, %v163
    %vm178 = vcmp.eq.s32.totalorder %v41, %v159
    %vm179 = vcmp.eq.s32.totalorder %v41, %v163
    %vm180 = vcmp.eq.s32.totalorder %v42, %v159
    %vm181 = vcmp.eq.s32.totalorder %v42, %v163
    %vm182 = vcmp.eq.s32.totalorder %v43, %v159
    %vm183 = vcmp.eq.s32.totalorder %v43, %v163
    %vm184 = vcmp.eq.s32.totalorder %v44, %v159
    %vm185 = vcmp.eq.s32.totalorder %v44, %v163
    %vm186 = vcmp.eq.s32.totalorder %v45, %v159
    %vm187 = vcmp.eq.s32.totalorder %v45, %v163
    %vm188 = vcmp.eq.s32.totalorder %v46, %v159
    %vm189 = vcmp.eq.s32.totalorder %v46, %v163
    %vm190 = vcmp.eq.s32.totalorder %v47, %v159
    %vm191 = vcmp.eq.s32.totalorder %v47, %v163
    %vm192 = vcmp.eq.s32.totalorder %v48, %v159
    %vm193 = vcmp.eq.s32.totalorder %v48, %v163
    %vm194 = vcmp.eq.s32.totalorder %v49, %v159
    %vm195 = vcmp.eq.s32.totalorder %v49, %v163
    %v196 = vsel %vm164, 1, 0
    %v197 = vsel %vm165, 1, 0
    %v198 = vsel %vm166, 1, 0
    %v199 = vsel %vm167, 1, 0
    %v200 = vsel %vm168, 1, 0
    %v201 = vsel %vm169, 1, 0
    %v202 = vsel %vm170, 1, 0
    %v203 = vsel %vm171, 1, 0
    %v204 = vsel %vm172, 1, 0
    %v205 = vsel %vm173, 1, 0
    %v206 = vsel %vm174, 1, 0
    %v207 = vsel %vm175, 1, 0
    %v208 = vsel %vm176, 1, 0
    %v209 = vsel %vm177, 1, 0
    %v210 = vsel %vm178, 1, 0
    %v211 = vsel %vm179, 1, 0
    %v212 = vsel %vm180, 1, 0
    %v213 = vsel %vm181, 1, 0
    %v214 = vsel %vm182, 1, 0
    %v215 = vsel %vm183, 1, 0
    %v216 = vsel %vm184, 1, 0
    %v217 = vsel %vm185, 1, 0
    %v218 = vsel %vm186, 1, 0
    %v219 = vsel %vm187, 1, 0
    %v220 = vsel %vm188, 1, 0
    %v221 = vsel %vm189, 1, 0
    %v222 = vsel %vm190, 1, 0
    %v223 = vsel %vm191, 1, 0
    %v224 = vsel %vm192, 1, 0
    %v225 = vsel %vm193, 1, 0
    %v226 = vsel %vm194, 1, 0
    %v227 = vsel %vm195, 1, 0
    %v228 = vcvt.s32.f32 %v196
    %v229 = vcvt.s32.f32 %v197
    %v230 = vcvt.s32.f32 %v198
    %v231 = vcvt.s32.f32 %v199
    %v232 = vcvt.s32.f32 %v200
    %v233 = vcvt.s32.f32 %v201
    %v234 = vcvt.s32.f32 %v202
    %v235 = vcvt.s32.f32 %v203
    %v236 = vcvt.s32.f32 %v204
    %v237 = vcvt.s32.f32 %v205
    %v238 = vcvt.s32.f32 %v206
    %v239 = vcvt.s32.f32 %v207
    %v240 = vcvt.s32.f32 %v208
    %v241 = vcvt.s32.f32 %v209
    %v242 = vcvt.s32.f32 %v210
    %v243 = vcvt.s32.f32 %v211
    %v244 = vcvt.s32.f32 %v212
    %v245 = vcvt.s32.f32 %v213
    %v246 = vcvt.s32.f32 %v214
    %v247 = vcvt.s32.f32 %v215
    %v248 = vcvt.s32.f32 %v216
    %v249 = vcvt.s32.f32 %v217
    %v250 = vcvt.s32.f32 %v218
    %v251 = vcvt.s32.f32 %v219
    %v252 = vcvt.s32.f32 %v220
    %v253 = vcvt.s32.f32 %v221
    %v254 = vcvt.s32.f32 %v222
    %v255 = vcvt.s32.f32 %v223
    %v256 = vcvt.s32.f32 %v224
    %v257 = vcvt.s32.f32 %v225
    %v258 = vcvt.s32.f32 %v226
    %v259 = vcvt.s32.f32 %v227
    %260 = vmatprep.subr.mxu0 %v124
    %261 = vmatpush1.msra.mxu0 %v123
    %262 = vmatprep.subr.mxu0 %v126
    %263 = vmatpush1.msra.mxu0 %v125
    %264 = vmatprep.subr.mxu0 %v128
    %265 = vmatpush1.msra.mxu0 %v127
    %266 = vmatprep.subr.mxu0 %v130
    %267 = vmatpush1.msra.mxu0 %v129
    %268 = vmatprep.subr.mxu0 %v132
    %269 = vmatpush1.msra.mxu0 %v131
    %270 = vmatprep.subr.mxu0 %v134
    %271 = vmatpush1.msra.mxu0 %v133
    %272 = vmatprep.subr.mxu0 %v136
    %273 = vmatpush1.msra.mxu0 %v135
    %274 = vmatprep.subr.mxu0 %v138
    %275 = vmatpush1.msra.mxu0 %v137
    %276 = vmatprep.subr.mxu0 %v140
    %277 = vmatpush1.msra.mxu0 %v139
    %278 = vmatprep.subr.mxu0 %v142
    %279 = vmatpush1.msra.mxu0 %v141
    %280 = vmatprep.subr.mxu0 %v144
    %281 = vmatpush1.msra.mxu0 %v143
    %282 = vmatprep.subr.mxu0 %v146
    %283 = vmatpush1.msra.mxu0 %v145
    %284 = vmatprep.subr.mxu0 %v148
    %285 = vmatpush1.msra.mxu0 %v147
    %286 = vmatprep.subr.mxu0 %v150
    %287 = vmatpush1.msra.mxu0 %v149
    %288 = vmatprep.subr.mxu0 %v152
    %289 = vmatpush1.msra.mxu0 %v151
    %290 = vmatprep.subr.mxu0 %v154
    %291 = vmatpush1.msra.mxu0 %v153
    %292 = vmatprep.subr.mxu0 0.0
    %293 = vmatpush1.msra.mxu0 0.0
    %294 = vmatprep.subr.mxu0 0.0
    %295 = vmatpush1.msra.mxu0 0.0
    %296 = vmatprep.subr.mxu0 0.0
    %297 = vmatpush1.msra.mxu0 0.0
    %298 = vmatprep.subr.mxu0 0.0
    %299 = vmatpush1.msra.mxu0 0.0
    %300 = vmatprep.subr.mxu0 0.0
    %301 = vmatpush1.msra.mxu0 0.0
    %302 = vmatprep.subr.mxu0 0.0
    %303 = vmatpush1.msra.mxu0 0.0
    %304 = vmatprep.subr.mxu0 0.0
    %305 = vmatpush1.msra.mxu0 0.0
    %306 = vmatprep.subr.mxu0 0.0
    %307 = vmatpush1.msra.mxu0 0.0
    %308 = vmatprep.subr.mxu0 0.0
    %309 = vmatpush1.msra.mxu0 0.0
    %310 = vmatprep.subr.mxu0 0.0
    %311 = vmatpush1.msra.mxu0 0.0
    %312 = vmatprep.subr.mxu0 0.0
    %313 = vmatpush1.msra.mxu0 0.0
    %314 = vmatprep.subr.mxu0 0.0
    %315 = vmatpush1.msra.mxu0 0.0
    %316 = vmatprep.subr.mxu0 0.0
    %317 = vmatpush1.msra.mxu0 0.0
    %318 = vmatprep.subr.mxu0 0.0
    %319 = vmatpush1.msra.mxu0 0.0
    %320 = vmatprep.subr.mxu0 0.0
    %321 = vmatpush1.msra.mxu0 0.0
    %322 = vmatprep.subr.mxu0 0.0
    %323 = vmatpush1.msra.mxu0 0.0
    %324 = vmatprep.mubr.f32.mxu0 0.0
    %325 = vmatmul.mubr.f32.gmra.mrb[0].mxu0 %v29
    %v326 = vpop.f32.mrb[0].mxu0
    %v327 = vadd.f32 0.0, %v326
    %v328 = vpop.f32.mrb[0].mxu0
    %v329 = vadd.f32 0.0, %v328
    %330 = vmatprep.mubr.f32.mxu0 0.0
    %331 = vmatmul.mubr.f32.gmra.mrb[0].mxu0 %v30
    %v332 = vpop.f32.mrb[0].mxu0
    %v333 = vadd.f32 0.0, %v332
    %v334 = vpop.f32.mrb[0].mxu0
    %v335 = vadd.f32 0.0, %v334
    %336 = vmatprep.mubr.f32.mxu0 0.0
    %337 = vmatmul.mubr.f32.gmra.mrb[0].mxu0 %v31
    %v338 = vpop.f32.mrb[0].mxu0
    %v339 = vadd.f32 0.0, %v338
    %v340 = vpop.f32.mrb[0].mxu0
    %v341 = vadd.f32 0.0, %v340
    %342 = vmatprep.mubr.f32.mxu0 0.0
    %343 = vmatmul.mubr.f32.gmra.mrb[0].mxu0 %v32
    %v344 = vpop.f32.mrb[0].mxu0
    %v345 = vadd.f32 0.0, %v344
    %v346 = vpop.f32.mrb[0].mxu0
    %v347 = vadd.f32 0.0, %v346
    %348 = vdwg.mxu0
    %349 = vmatprep.subr.mxu0 %v229
    %350 = vmatpush1.msra.mxu0 %v228
    %351 = vmatprep.subr.mxu0 %v231
    %352 = vmatpush1.msra.mxu0 %v230
    %353 = vmatprep.subr.mxu0 %v233
    %354 = vmatpush1.msra.mxu0 %v232
    %355 = vmatprep.subr.mxu0 %v235
    %356 = vmatpush1.msra.mxu0 %v234
    %357 = vmatprep.subr.mxu0 %v237
    %358 = vmatpush1.msra.mxu0 %v236
    %359 = vmatprep.subr.mxu0 %v239
    %360 = vmatpush1.msra.mxu0 %v238
    %361 = vmatprep.subr.mxu0 %v241
    %362 = vmatpush1.msra.mxu0 %v240
    %363 = vmatprep.subr.mxu0 %v243
    %364 = vmatpush1.msra.mxu0 %v242
    %365 = vmatprep.subr.mxu0 %v245
    %366 = vmatpush1.msra.mxu0 %v244
    %367 = vmatprep.subr.mxu0 %v247
    %368 = vmatpush1.msra.mxu0 %v246
    %369 = vmatprep.subr.mxu0 %v249
    %370 = vmatpush1.msra.mxu0 %v248
    %371 = vmatprep.subr.mxu0 %v251
    %372 = vmatpush1.msra.mxu0 %v250
    %373 = vmatprep.subr.mxu0 %v253
    %374 = vmatpush1.msra.mxu0 %v252
    %375 = vmatprep.subr.mxu0 %v255
    %376 = vmatpush1.msra.mxu0 %v254
    %377 = vmatprep.subr.mxu0 %v257
    %378 = vmatpush1.msra.mxu0 %v256
    %379 = vmatprep.subr.mxu0 %v259
    %380 = vmatpush1.msra.mxu0 %v258
    %381 = vmatprep.subr.mxu0 0.0
    %382 = vmatpush1.msra.mxu0 0.0
    %383 = vmatprep.subr.mxu0 0.0
    %384 = vmatpush1.msra.mxu0 0.0
    %385 = vmatprep.subr.mxu0 0.0
    %386 = vmatpush1.msra.mxu0 0.0
    %387 = vmatprep.subr.mxu0 0.0
    %388 = vmatpush1.msra.mxu0 0.0
    %389 = vmatprep.subr.mxu0 0.0
    %390 = vmatpush1.msra.mxu0 0.0
    %391 = vmatprep.subr.mxu0 0.0
    %392 = vmatpush1.msra.mxu0 0.0
    %393 = vmatprep.subr.mxu0 0.0
    %394 = vmatpush1.msra.mxu0 0.0
    %395 = vmatprep.subr.mxu0 0.0
    %396 = vmatpush1.msra.mxu0 0.0
    %397 = vmatprep.subr.mxu0 0.0
    %398 = vmatpush1.msra.mxu0 0.0
    %399 = vmatprep.subr.mxu0 0.0
    %400 = vmatpush1.msra.mxu0 0.0
    %401 = vmatprep.subr.mxu0 0.0
    %402 = vmatpush1.msra.mxu0 0.0
    %403 = vmatprep.subr.mxu0 0.0
    %404 = vmatpush1.msra.mxu0 0.0
    %405 = vmatprep.subr.mxu0 0.0
    %406 = vmatpush1.msra.mxu0 0.0
    %407 = vmatprep.subr.mxu0 0.0
    %408 = vmatpush1.msra.mxu0 0.0
    %409 = vmatprep.subr.mxu0 0.0
    %410 = vmatpush1.msra.mxu0 0.0
    %411 = vmatprep.subr.mxu0 0.0
    %412 = vmatpush1.msra.mxu0 0.0
    %413 = vmatprep.mubr.f32.mxu0 0.0
    %414 = vmatmul.mubr.f32.gmra.mrb[0].mxu0 %v29
    %v415 = vpop.f32.mrb[0].mxu0
    %v416 = vadd.f32 0.0, %v415
    %v417 = vpop.f32.mrb[0].mxu0
    %v418 = vadd.f32 0.0, %v417
    %419 = vmatprep.mubr.f32.mxu0 0.0
    %420 = vmatmul.mubr.f32.gmra.mrb[0].mxu0 %v30
    %v421 = vpop.f32.mrb[0].mxu0
    %v422 = vadd.f32 0.0, %v421
    %v423 = vpop.f32.mrb[0].mxu0
    %v424 = vadd.f32 0.0, %v423
    %425 = vmatprep.mubr.f32.mxu0 0.0
    %426 = vmatmul.mubr.f32.gmra.mrb[0].mxu0 %v31
    %v427 = vpop.f32.mrb[0].mxu0
    %v428 = vadd.f32 0.0, %v427
    %v429 = vpop.f32.mrb[0].mxu0
    %v430 = vadd.f32 0.0, %v429
    %431 = vmatprep.mubr.f32.mxu0 0.0
    %432 = vmatmul.mubr.f32.gmra.mrb[0].mxu0 %v32
    %v433 = vpop.f32.mrb[0].mxu0
    %v434 = vadd.f32 0.0, %v433
    %v435 = vpop.f32.mrb[0].mxu0
    %v436 = vadd.f32 0.0, %v435
    %437 = vdwg.mxu0
    %v438 = vmul.f32 %v327, %v416
    %v439 = vmul.f32 %v329, %v418
    %v440 = vmul.f32 %v333, %v422
    %v441 = vmul.f32 %v335, %v424
    %v442 = vmul.f32 %v339, %v428
    %v443 = vmul.f32 %v341, %v430
    %v444 = vmul.f32 %v345, %v434
    %v445 = vmul.f32 %v347, %v436
    %v446 = vlaneseq
    %v447 = vand.u32 %v446, 127
    %v448 = vmul.u32 %v34, 8
    %vm449 = vcmp.ge.s32.totalorder %v447, %v448
    %v450 = vadd.s32 %v448, 8
    %vm451 = vcmp.lt.s32.totalorder %v447, %v450
    %vm452 = vmand %vm449, %vm451
    %v453 = vsel %vm452, 1, 0
    %v454 = vcvt.s32.f32 %v453
    %vm455 = vcmask 261120
    %v457 = vsel %vm455, %v454, 0
    %459 = vmatprep.subr.mxu0 %v439
    %460 = vmatpush1.msra.mxu0 %v438
    %461 = vmatprep.subr.mxu0 %v441
    %462 = vmatpush1.msra.mxu0 %v440
    %463 = vmatprep.subr.mxu0 %v443
    %464 = vmatpush1.msra.mxu0 %v442
    %465 = vmatprep.subr.mxu0 %v445
    %466 = vmatpush1.msra.mxu0 %v444
    %467 = vmatprep.subr.mxu0 0.0
    %468 = vmatpush1.msra.mxu0 0.0
    %469 = vmatprep.subr.mxu0 0.0
    %470 = vmatpush1.msra.mxu0 0.0
    %471 = vmatprep.subr.mxu0 0.0
    %472 = vmatpush1.msra.mxu0 0.0
    %473 = vmatprep.subr.mxu0 0.0
    %474 = vmatpush1.msra.mxu0 0.0
    %475 = vmatprep.subr.mxu0 0.0
    %476 = vmatpush1.msra.mxu0 0.0
    %477 = vmatprep.subr.mxu0 0.0
    %478 = vmatpush1.msra.mxu0 0.0
    %479 = vmatprep.subr.mxu0 0.0
    %480 = vmatpush1.msra.mxu0 0.0
    %481 = vmatprep.subr.mxu0 0.0
    %482 = vmatpush1.msra.mxu0 0.0
    %483 = vmatprep.subr.mxu0 0.0
    %484 = vmatpush1.msra.mxu0 0.0
    %485 = vmatprep.subr.mxu0 0.0
    %486 = vmatpush1.msra.mxu0 0.0
    %487 = vmatprep.subr.mxu0 0.0
    %488 = vmatpush1.msra.mxu0 0.0
    %489 = vmatprep.subr.mxu0 0.0
    %490 = vmatpush1.msra.mxu0 0.0
    %491 = vmatprep.subr.mxu0 0.0
    %492 = vmatpush1.msra.mxu0 0.0
    %493 = vmatprep.subr.mxu0 0.0
    %494 = vmatpush1.msra.mxu0 0.0
    %495 = vmatprep.subr.mxu0 0.0
    %496 = vmatpush1.msra.mxu0 0.0
    %497 = vmatprep.subr.mxu0 0.0
    %498 = vmatpush1.msra.mxu0 0.0
    %499 = vmatprep.subr.mxu0 0.0
    %500 = vmatpush1.msra.mxu0 0.0
    %501 = vmatprep.subr.mxu0 0.0
    %502 = vmatpush1.msra.mxu0 0.0
    %503 = vmatprep.subr.mxu0 0.0
    %504 = vmatpush1.msra.mxu0 0.0
    %505 = vmatprep.subr.mxu0 0.0
    %506 = vmatpush1.msra.mxu0 0.0
    %507 = vmatprep.subr.mxu0 0.0
    %508 = vmatpush1.msra.mxu0 0.0
    %509 = vmatprep.subr.mxu0 0.0
    %510 = vmatpush1.msra.mxu0 0.0
    %511 = vmatprep.subr.mxu0 0.0
    %512 = vmatpush1.msra.mxu0 0.0
    %513 = vmatprep.subr.mxu0 0.0
    %514 = vmatpush1.msra.mxu0 0.0
    %515 = vmatprep.subr.mxu0 0.0
    %516 = vmatpush1.msra.mxu0 0.0
    %517 = vmatprep.subr.mxu0 0.0
    %518 = vmatpush1.msra.mxu0 0.0
    %519 = vmatprep.subr.mxu0 0.0
    %520 = vmatpush1.msra.mxu0 0.0
    %521 = vmatprep.subr.mxu0 0.0
    %522 = vmatpush1.msra.mxu0 0.0
    %523 = vmatprep.mubr.f32.mxu0 0.0
    %524 = vmatmul.mubr.f32.gmra.mrb[0].mxu0 %v457
    %v525 = vpop.f32.mrb[0].mxu0
    %v526 = vadd.f32 0.0, %v525
    %v527 = vpop.f32.mrb[0].mxu0
    %v528 = vadd.f32 0.0, %v527
    %529 = vdwg.mxu0
    %vm530 = vcmask 1043456
    %v531 = vsel %vm530, %v526, -inf
    %v532 = vrot.slane %v531, 4
    %v533 = vmax.f32 %v531, %v532
    %v534 = vrot.slane %v533, 2
    %v535 = vmax.f32 %v533, %v534
    %v536 = vrot.slane %v535, 1
    %v537 = vmax.f32 %v535, %v536
    %v538 = vsel %vm530, %v528, -inf
    %v539 = vrot.slane %v538, 4
    %v540 = vmax.f32 %v538, %v539
    %v541 = vrot.slane %v540, 2
    %v542 = vmax.f32 %v540, %v541
    %v543 = vrot.slane %v542, 1
    %v544 = vmax.f32 %v542, %v543
    %v545 = vsub.f32 %v526, %v537
    %v546 = vsub.f32 %v528, %v544
    %v547 = vmul.f32 %v545, 1.442695
    %v548 = vpow.pop %v547
    %v549 = vmul.f32 %v546, 1.442695
    %v550 = vpow.pop %v549
    %v551 = vsel %vm530, %v548, 0.0
    %v552 = vrot.slane %v551, 4
    %v553 = vadd.f32 %v551, %v552
    %v554 = vrot.slane %v553, 2
    %v555 = vadd.f32 %v553, %v554
    %v556 = vrot.slane %v555, 1
    %v557 = vadd.f32 %v555, %v556
    %v558 = vsel %vm530, %v550, 0.0
    %v559 = vrot.slane %v558, 4
    %v560 = vadd.f32 %v558, %v559
    %v561 = vrot.slane %v560, 2
    %v562 = vadd.f32 %v560, %v561
    %v563 = vrot.slane %v562, 1
    %v564 = vadd.f32 %v562, %v563
    %v565 = vrcp.pop %v557
    %v566 = vrcp.pop %v564
    %v567 = vmul.f32 %v548, %v565
    %v568 = vmul.f32 %v550, %v566
    %v571 = vcombine.low %v567, %v568
    %573 = vst [vmem:[#allocation5] sm:$0xff] %v571
    // Predicated region
    $region18: #{tpu_custom_call.1} parent=1 // pred_check
      _
    $region19: #{tpu_custom_call.1} parent=1 // pred_check_branch
      %575 = sbr.rel (0) target = $region21
    $region20: #{tpu_custom_call.1} parent=1 // pred_region
      %s577 = ssub.s32 128, 128
      %578 = vsyncadd [#allocation4], %s577
      %s580 = sshll.u32 [#allocation5], 4
      %s581 = int_to_ptr.vmem [resolvable:$true] %s580
      %583 = dma.vmem_to_hbm [thread:$0]  %s581, 128, %s3, [#allocation4]
    $region21: #{tpu_custom_call.1} parent=1 // pred_fallthru
      _
    // Predicated region
    $region22: #{tpu_custom_call.1} parent=1 // pred_check
      _
    $region23: #{tpu_custom_call.1} parent=1 // pred_check_branch
      %585 = sbr.rel (0) target = $region25
    $region24: #{tpu_custom_call.1} parent=1 // pred_region
      %586 = dma.done [#allocation4], 128
    $region25: #{tpu_custom_call.1} parent=1 // pred_fallthru
      _
    %587 = vsyncpa [#allocation3], 1
    %588 = vsyncpa [#allocation4], 1

</llo_original>
